<compile_context>
chip_gen: v6e
topology: v6e:2x2x1
jax: 0.10.0
libtpu: 0.0.40
codegen_flags: <defaults>
</compile_context>

<pallas_src>
import jax
import jax.numpy as jnp
import numpy as np
from jax.experimental import pallas as pl
from jax.experimental.pallas import tpu as pltpu

LN_EPS = 1e-5  # torch.nn.LayerNorm default eps


def _round_up(x, m):
    return (x + m - 1) // m * m


# ----------------------------------------------------------------------------
# Pallas kernel: fused  Linear(no bias) -> LayerNorm -> L2-normalize
# for BOTH projection heads, one batch tile (TB rows) per grid step.
# ----------------------------------------------------------------------------
def _clip_dual_head_kernel(xi_ref, xt_ref, wi_ref, wt_ref, gbi_ref, gbt_ref,
                           oi_ref, ot_ref):
    # xi_ref : (TB, D_img)   f32   image features (unpadded K)
    # xt_ref : (TB, D_txt)   f32   text features  (unpadded K)
    # w*_ref : (D_in, D_emb) bf16  pre-transposed nn.Linear weight (x @ W)
    # gb*_ref: (2, D_emb)    f32   row 0 = gamma, row 1 = beta
    # o*_ref : (TB, D_emb)   f32
    def head(x_ref, w_ref, gb_ref, o_ref):
        # bf16 MXU inputs (cast in-register), f32 accumulation.
        y = jnp.dot(x_ref[...].astype(jnp.bfloat16), w_ref[...],
                    preferred_element_type=jnp.float32)
        inv_d = 1.0 / y.shape[-1]
        # Single-pass LayerNorm statistics: var = E[y^2] - mean^2 (clamped).
        mean = jnp.sum(y, axis=-1, keepdims=True) * inv_d
        mean_sq = jnp.sum(y * y, axis=-1, keepdims=True) * inv_d
        var = jnp.maximum(mean_sq - mean * mean, 0.0)
        yn = (y - mean) * jax.lax.rsqrt(var + LN_EPS)
        yn = yn * gb_ref[0:1, :] + gb_ref[1:2, :]
        # L2-normalize rows: embedding / embedding.norm(dim=-1, keepdim=True)
        # (no eps, matching the PyTorch reference exactly).
        inv_norm = jax.lax.rsqrt(jnp.sum(yn * yn, axis=-1, keepdims=True))
        o_ref[...] = (yn * inv_norm).astype(o_ref.dtype)

    head(xi_ref, wi_ref, gbi_ref, oi_ref)
    head(xt_ref, wt_ref, gbt_ref, ot_ref)


# ----------------------------------------------------------------------------
# One-time parameter preprocessing (hoisted OUT of the per-call path).
# ----------------------------------------------------------------------------
def prepare_projection_params(w, gamma, beta):
    """w: (D_in, D_emb) f32 (pre-transposed nn.Linear weight), gamma/beta: (D_emb,)."""
    return {
        "w_bf16": jnp.asarray(w, jnp.bfloat16),                       # (D_in, D_emb)
        "gb": jnp.stack([jnp.asarray(gamma, jnp.float32),
                         jnp.asarray(beta, jnp.float32)], axis=0),    # (2, D_emb)
    }


def _pick_batch_tile(B, d_img, d_txt, d_emb):
    # Largest batch tile (multiple of 16 for bf16 sublane packing, capped at
    # 512) whose double-buffered activation-input + output tiles fit a ~16 MiB
    # budget -> comfortably inside v7x's 32 MiB scoped VMEM and far below
    # v5e/v6e's 128 MiB physical VMEM.
    budget = 16 * 1024 * 1024
    bytes_per_row = 2 * 4 * (d_img + d_txt + 2 * d_emb)   # 2 pipeline buffers, f32
    cap = max(16, (budget // max(bytes_per_row, 1)) // 16 * 16)
    return max(16, min(512, cap, _round_up(B, 16)))


def clip_dual_projection(img_feat, txt_feat, img_proj, txt_proj):
    """Both projection heads in one pallas_call.

    img_feat: (B, D_img) f32, txt_feat: (B, D_txt) f32  (unpadded).
    img_proj / txt_proj: dicts from prepare_projection_params.
    Returns (img_emb, txt_emb), each (B, D_emb) f32.
    """
    B = img_feat.shape[0]
    assert txt_feat.shape[0] == B
    d_img, d_txt = img_feat.shape[1], txt_feat.shape[1]
    img_w, txt_w = img_proj["w_bf16"], txt_proj["w_bf16"]
    img_gb, txt_gb = img_proj["gb"], txt_proj["gb"]
    D_emb = img_w.shape[1]
    assert txt_w.shape[1] == D_emb

    TB = _pick_batch_tile(B, d_img, d_txt, D_emb)
    B_pad = _round_up(B, TB)
    img_feat = img_feat.astype(jnp.float32)
    txt_feat = txt_feat.astype(jnp.float32)
    if B_pad != B:
        # Edge-pad the few extra batch rows so padded rows hold real, finite
        # data (avoids NaN from L2-normalizing an all-zero row); sliced off below.
        pad = B_pad - B
        img_feat = jnp.pad(img_feat, ((0, pad), (0, 0)), mode="edge")
        txt_feat = jnp.pad(txt_feat, ((0, pad), (0, 0)), mode="edge")

    flops = 2 * B_pad * D_emb * (d_img + d_txt)
    bytes_accessed = (B_pad * (d_img + d_txt) * 4        # activations (f32 read)
                      + (d_img + d_txt) * D_emb * 2      # weights (bf16 read)
                      + 2 * 2 * D_emb * 4                # gamma/beta
                      + 2 * B_pad * D_emb * 4)           # outputs (f32 write)
    cost = pl.CostEstimate(flops=int(flops),
                           transcendentals=int(4 * B_pad),  # 2 rsqrt / row / head
                           bytes_accessed=int(bytes_accessed))

    img_out, txt_out = pl.pallas_call(
        _clip_dual_head_kernel,
        out_shape=(jax.ShapeDtypeStruct((B_pad, D_emb), jnp.float32),
                   jax.ShapeDtypeStruct((B_pad, D_emb), jnp.float32)),
        grid=(B_pad // TB,),
        in_specs=[
            pl.BlockSpec((TB, d_img), lambda i: (i, 0)),
            pl.BlockSpec((TB, d_txt), lambda i: (i, 0)),
            pl.BlockSpec((d_img, D_emb), lambda i: (0, 0)),
            pl.BlockSpec((d_txt, D_emb), lambda i: (0, 0)),
            pl.BlockSpec((2, D_emb), lambda i: (0, 0)),
            pl.BlockSpec((2, D_emb), lambda i: (0, 0)),
        ],
        out_specs=(
            pl.BlockSpec((TB, D_emb), lambda i: (i, 0)),
            pl.BlockSpec((TB, D_emb), lambda i: (i, 0)),
        ),
        compiler_params=pltpu.CompilerParams(
            dimension_semantics=("parallel",),
            vmem_limit_bytes=32 * 1024 * 1024,
        ),
        cost_estimate=cost,
    )(img_feat, txt_feat, img_w, txt_w, img_gb, txt_gb)

    return img_out[:B], txt_out[:B]


# ----------------------------------------------------------------------------
# TODO(synk): image_encoder / text_encoder are injected constructor arguments
# of the PyTorch CLIP module (not defined in it); realized here as small
# deterministic plain-JAX stand-ins.
# ----------------------------------------------------------------------------
def image_encoder_fwd(images, p):
    # images: (B, C, H, W) NCHW -> global average pool over H,W -> linear.
    pooled = jnp.mean(images, axis=(2, 3))              # (B, C)
    return pooled @ p["w"] + p["b"]                     # (B, IMG_OUT_DIM)


def text_encoder_fwd(input_ids, attention_mask, p):
    # input_ids: (B, L) int32, attention_mask: (B, L) -> masked mean pooling.
    emb = p["emb"][input_ids]                           # (B, L, TXT_OUT_DIM)
    mask = attention_mask[..., None].astype(emb.dtype)
    denom = jnp.clip(jnp.sum(mask, axis=1), 1.0, None)
    return jnp.sum(emb * mask, axis=1) / denom          # (B, TXT_OUT_DIM)


# ----------------------------------------------------------------------------
# CLIP forward
# ----------------------------------------------------------------------------
def clip_forward(params, images, input_ids, attention_mask):
    image_features_raw = image_encoder_fwd(images, params["image_encoder"])
    text_features_raw = text_encoder_fwd(input_ids, attention_mask,
                                         params["text_encoder"])
    image_embedding, text_embedding = clip_dual_projection(
        image_features_raw, text_features_raw,
        params["image_projection"], params["text_projection"])
    # logit_scale is a module parameter but is not used in forward().
    return image_embedding, text_embedding


# Pure-JAX reference for the projection head (PyTorch semantics).
def _projection_ref(x, w, gamma, beta, matmul_dtype=jnp.float32):
    y = jnp.dot(x.astype(matmul_dtype), w.astype(matmul_dtype),
                preferred_element_type=jnp.float32)
    mean = jnp.mean(y, axis=-1, keepdims=True)
    var = jnp.mean((y - mean) ** 2, axis=-1, keepdims=True)
    y = (y - mean) / jnp.sqrt(var + LN_EPS)
    y = y * gamma + beta
    return y / jnp.linalg.norm(y, axis=-1, keepdims=True)


if __name__ == "__main__":
    # Small shapes consistent with the module's forward.
    B, C, H, W = 8, 4, 16, 16       # images NCHW
    L, VOCAB = 8, 32                # text sequence
    IMG_OUT_DIM = 64                # image_encoder.output_dim
    TXT_OUT_DIM = 32                # text_encoder.output_dim
    SHARED_DIM = 128                # shared_embedding_dim

    key = jax.random.PRNGKey(0)
    keys = jax.random.split(key, 12)

    # Raw (PyTorch-equivalent) parameters.
    img_proj_w = jax.random.normal(keys[3], (IMG_OUT_DIM, SHARED_DIM), jnp.float32) \
        * (1.0 / np.sqrt(IMG_OUT_DIM))
    txt_proj_w = jax.random.normal(keys[4], (TXT_OUT_DIM, SHARED_DIM), jnp.float32) \
        * (1.0 / np.sqrt(TXT_OUT_DIM))
    img_gamma = 1.0 + 0.1 * jax.random.normal(keys[8], (SHARED_DIM,), jnp.float32)
    img_beta = 0.05 * jax.random.normal(keys[9], (SHARED_DIM,), jnp.float32)
    txt_gamma = 1.0 + 0.1 * jax.random.normal(keys[10], (SHARED_DIM,), jnp.float32)
    txt_beta = 0.05 * jax.random.normal(keys[11], (SHARED_DIM,), jnp.float32)

    params = {
        "image_encoder": {
            "w": jax.random.normal(keys[0], (C, IMG_OUT_DIM), jnp.float32) * 0.1,
            "b": jax.random.normal(keys[1], (IMG_OUT_DIM,), jnp.float32) * 0.01,
        },
        "text_encoder": {
            "emb": jax.random.normal(keys[2], (VOCAB, TXT_OUT_DIM), jnp.float32) * 0.1,
        },
        # One-time preprocessing: bf16 weights + packed (gamma, beta).
        "image_projection": prepare_projection_params(img_proj_w, img_gamma, img_beta),
        "text_projection": prepare_projection_params(txt_proj_w, txt_gamma, txt_beta),
        "logit_scale": jnp.log(jnp.asarray(1.0 / 0.07, jnp.float32)),  # unused in forward()
    }

    images = jax.random.normal(keys[5], (B, C, H, W), jnp.float32)
    input_ids = jax.random.randint(keys[6], (B, L), 0, VOCAB, dtype=jnp.int32)
    attention_mask = (jax.random.uniform(keys[7], (B, L)) > 0.3).astype(jnp.int32)

    fwd = jax.jit(clip_forward)
    img_emb, txt_emb = fwd(params, images, input_ids, attention_mask)
    img_emb = jax.block_until_ready(img_emb)
    txt_emb = jax.block_until_ready(txt_emb)
    assert img_emb.shape == (B, SHARED_DIM) and txt_emb.shape == (B, SHARED_DIM)
    assert np.all(np.isfinite(np.asarray(img_emb)))
    assert np.all(np.isfinite(np.asarray(txt_emb)))

    # ---------------- correctness checks ----------------
    img_feat = image_encoder_fwd(images, params["image_encoder"])
    txt_feat = text_encoder_fwd(input_ids, attention_mask, params["text_encoder"])

    # (a) tight check against a reference mirroring the kernel's bf16 matmul.
    img_ref_bf16 = _projection_ref(img_feat, img_proj_w, img_gamma, img_beta,
                                   matmul_dtype=jnp.bfloat16)
    txt_ref_bf16 = _projection_ref(txt_feat, txt_proj_w, txt_gamma, txt_beta,
                                   matmul_dtype=jnp.bfloat16)
    np.testing.assert_allclose(np.asarray(img_emb), np.asarray(img_ref_bf16),
                               rtol=2e-4, atol=2e-4)
    np.testing.assert_allclose(np.asarray(txt_emb), np.asarray(txt_ref_bf16),
                               rtol=2e-4, atol=2e-4)

    # (b) looser check against the full-f32 (PyTorch-semantics) reference,
    #     covering the bf16 matmul-input quantization.
    img_ref_f32 = _projection_ref(img_feat, img_proj_w, img_gamma, img_beta)
    txt_ref_f32 = _projection_ref(txt_feat, txt_proj_w, txt_gamma, txt_beta)
    np.testing.assert_allclose(np.asarray(img_emb), np.asarray(img_ref_f32),
                               rtol=2e-2, atol=2e-2)
    np.testing.assert_allclose(np.asarray(txt_emb), np.asarray(txt_ref_f32),
                               rtol=2e-2, atol=2e-2)

    print("KERNEL_OK")
</pallas_src>

<mosaic_0001>
module attributes {stable_mosaic.version = 11 : i64} {
  func.func @_clip_dual_head_kernel(%arg0: i32, %arg1: memref<16x64xf32, #tpu.memory_space<vmem>>, %arg2: memref<16x32xf32, #tpu.memory_space<vmem>>, %arg3: memref<64x128xbf16, #tpu.memory_space<vmem>>, %arg4: memref<32x128xbf16, #tpu.memory_space<vmem>>, %arg5: memref<2x128xf32, #tpu.memory_space<vmem>>, %arg6: memref<2x128xf32, #tpu.memory_space<vmem>>, %arg7: memref<16x128xf32, #tpu.memory_space<vmem>>, %arg8: memref<16x128xf32, #tpu.memory_space<vmem>>) attributes {dimension_semantics = [#tpu.dimension_semantics<parallel>], iteration_bounds = array<i64: 1>, scalar_prefetch = 0 : i64, scratch_operands = 0 : i64, tpu.core_type = #tpu.core_type<tc>, window_params = [{transform_indices = @transform_0, window_bounds = array<i64: 16, 64>}, {transform_indices = @transform_1, window_bounds = array<i64: 16, 32>}, {pipeline_mode = #tpu.pipeline_mode<synchronous>, transform_indices = @transform_2, window_bounds = array<i64: 64, 128>}, {pipeline_mode = #tpu.pipeline_mode<synchronous>, transform_indices = @transform_3, window_bounds = array<i64: 32, 128>}, {pipeline_mode = #tpu.pipeline_mode<synchronous>, transform_indices = @transform_4, window_bounds = array<i64: 2, 128>}, {pipeline_mode = #tpu.pipeline_mode<synchronous>, transform_indices = @transform_5, window_bounds = array<i64: 2, 128>}, {transform_indices = @transform_6, window_bounds = array<i64: 16, 128>}, {transform_indices = @transform_7, window_bounds = array<i64: 16, 128>}]} {
    %c0 = arith.constant 0 : index
    %c0_0 = arith.constant 0 : index
    %0 = vector.load %arg1[%c0, %c0_0] : memref<16x64xf32, #tpu.memory_space<vmem>>, vector<16x64xf32>
    %1 = arith.truncf %0 : vector<16x64xf32> to vector<16x64xbf16>
    %c0_1 = arith.constant 0 : index
    %c0_2 = arith.constant 0 : index
    %2 = vector.load %arg3[%c0_1, %c0_2] : memref<64x128xbf16, #tpu.memory_space<vmem>>, vector<64x128xbf16>
    %cst = arith.constant dense<0.000000e+00> : vector<16x128xf32>
    %3 = tpu.matmul %1, %2, %cst {dimension_numbers = #tpu.dot_dimension_numbers<[1], [0], [0], [1], [0, 0, 1, 1], [], []>} : vector<16x64xbf16>, vector<64x128xbf16>, vector<16x128xf32> -> vector<16x128xf32>
    %cst_3 = arith.constant dense<0.000000e+00> : vector<16xf32>
    %4 = vector.multi_reduction <add>, %3, %cst_3 [1] : vector<16x128xf32> to vector<16xf32>
    %5 = vector.shape_cast %4 : vector<16xf32> to vector<16x1xf32>
    %cst_4 = arith.constant 7.812500e-03 : f32
    %6 = vector.broadcast %cst_4 : f32 to vector<16x1xf32>
    %7 = arith.mulf %5, %6 : vector<16x1xf32>
    %8 = arith.mulf %3, %3 : vector<16x128xf32>
    %cst_5 = arith.constant dense<0.000000e+00> : vector<16xf32>
    %9 = vector.multi_reduction <add>, %8, %cst_5 [1] : vector<16x128xf32> to vector<16xf32>
    %10 = vector.shape_cast %9 : vector<16xf32> to vector<16x1xf32>
    %cst_6 = arith.constant 7.812500e-03 : f32
    %11 = vector.broadcast %cst_6 : f32 to vector<16x1xf32>
    %12 = arith.mulf %10, %11 : vector<16x1xf32>
    %13 = arith.mulf %7, %7 : vector<16x1xf32>
    %14 = arith.subf %12, %13 : vector<16x1xf32>
    %cst_7 = arith.constant 0.000000e+00 : f32
    %15 = vector.broadcast %cst_7 : f32 to vector<16x1xf32>
    %16 = arith.maximumf %14, %15 : vector<16x1xf32>
    %17 = vector.broadcast %7 : vector<16x1xf32> to vector<16x128xf32>
    %18 = arith.subf %3, %17 : vector<16x128xf32>
    %cst_8 = arith.constant 9.99999974E-6 : f32
    %19 = vector.broadcast %cst_8 : f32 to vector<16x1xf32>
    %20 = arith.addf %16, %19 : vector<16x1xf32>
    %21 = math.rsqrt %20 : vector<16x1xf32>
    %22 = vector.broadcast %21 : vector<16x1xf32> to vector<16x128xf32>
    %23 = arith.mulf %18, %22 : vector<16x128xf32>
    %c0_9 = arith.constant 0 : index
    %c0_10 = arith.constant 0 : index
    %24 = vector.load %arg5[%c0_9, %c0_10] : memref<2x128xf32, #tpu.memory_space<vmem>>, vector<1x128xf32>
    %25 = vector.broadcast %24 : vector<1x128xf32> to vector<16x128xf32>
    %26 = arith.mulf %23, %25 : vector<16x128xf32>
    %c1 = arith.constant 1 : index
    %c0_11 = arith.constant 0 : index
    %27 = vector.load %arg5[%c1, %c0_11] : memref<2x128xf32, #tpu.memory_space<vmem>>, vector<1x128xf32>
    %28 = vector.broadcast %27 : vector<1x128xf32> to vector<16x128xf32>
    %29 = arith.addf %26, %28 : vector<16x128xf32>
    %30 = arith.mulf %29, %29 : vector<16x128xf32>
    %cst_12 = arith.constant dense<0.000000e+00> : vector<16xf32>
    %31 = vector.multi_reduction <add>, %30, %cst_12 [1] : vector<16x128xf32> to vector<16xf32>
    %32 = vector.shape_cast %31 : vector<16xf32> to vector<16x1xf32>
    %33 = math.rsqrt %32 : vector<16x1xf32>
    %34 = vector.broadcast %33 : vector<16x1xf32> to vector<16x128xf32>
    %35 = arith.mulf %29, %34 : vector<16x128xf32>
    %c0_13 = arith.constant 0 : index
    %c0_14 = arith.constant 0 : index
    %36 = vector.load %arg7[%c0_13, %c0_14] : memref<16x128xf32, #tpu.memory_space<vmem>>, vector<16x128xf32>
    tpu.vector_store %arg7[%c0_13, %c0_14], %35 {strides = array<i32>} : memref<16x128xf32, #tpu.memory_space<vmem>>, vector<16x128xf32>,
    %c0_15 = arith.constant 0 : index
    %c0_16 = arith.constant 0 : index
    %37 = vector.load %arg2[%c0_15, %c0_16] : memref<16x32xf32, #tpu.memory_space<vmem>>, vector<16x32xf32>
    %38 = arith.truncf %37 : vector<16x32xf32> to vector<16x32xbf16>
    %c0_17 = arith.constant 0 : index
    %c0_18 = arith.constant 0 : index
    %39 = vector.load %arg4[%c0_17, %c0_18] : memref<32x128xbf16, #tpu.memory_space<vmem>>, vector<32x128xbf16>
    %cst_19 = arith.constant dense<0.000000e+00> : vector<16x128xf32>
    %40 = tpu.matmul %38, %39, %cst_19 {dimension_numbers = #tpu.dot_dimension_numbers<[1], [0], [0], [1], [0, 0, 1, 1], [], []>} : vector<16x32xbf16>, vector<32x128xbf16>, vector<16x128xf32> -> vector<16x128xf32>
    %cst_20 = arith.constant dense<0.000000e+00> : vector<16xf32>
    %41 = vector.multi_reduction <add>, %40, %cst_20 [1] : vector<16x128xf32> to vector<16xf32>
    %42 = vector.shape_cast %41 : vector<16xf32> to vector<16x1xf32>
    %cst_21 = arith.constant 7.812500e-03 : f32
    %43 = vector.broadcast %cst_21 : f32 to vector<16x1xf32>
    %44 = arith.mulf %42, %43 : vector<16x1xf32>
    %45 = arith.mulf %40, %40 : vector<16x128xf32>
    %cst_22 = arith.constant dense<0.000000e+00> : vector<16xf32>
    %46 = vector.multi_reduction <add>, %45, %cst_22 [1] : vector<16x128xf32> to vector<16xf32>
    %47 = vector.shape_cast %46 : vector<16xf32> to vector<16x1xf32>
    %cst_23 = arith.constant 7.812500e-03 : f32
    %48 = vector.broadcast %cst_23 : f32 to vector<16x1xf32>
    %49 = arith.mulf %47, %48 : vector<16x1xf32>
    %50 = arith.mulf %44, %44 : vector<16x1xf32>
    %51 = arith.subf %49, %50 : vector<16x1xf32>
    %cst_24 = arith.constant 0.000000e+00 : f32
    %52 = vector.broadcast %cst_24 : f32 to vector<16x1xf32>
    %53 = arith.maximumf %51, %52 : vector<16x1xf32>
    %54 = vector.broadcast %44 : vector<16x1xf32> to vector<16x128xf32>
    %55 = arith.subf %40, %54 : vector<16x128xf32>
    %cst_25 = arith.constant 9.99999974E-6 : f32
    %56 = vector.broadcast %cst_25 : f32 to vector<16x1xf32>
    %57 = arith.addf %53, %56 : vector<16x1xf32>
    %58 = math.rsqrt %57 : vector<16x1xf32>
    %59 = vector.broadcast %58 : vector<16x1xf32> to vector<16x128xf32>
    %60 = arith.mulf %55, %59 : vector<16x128xf32>
    %c0_26 = arith.constant 0 : index
    %c0_27 = arith.constant 0 : index
    %61 = vector.load %arg6[%c0_26, %c0_27] : memref<2x128xf32, #tpu.memory_space<vmem>>, vector<1x128xf32>
    %62 = vector.broadcast %61 : vector<1x128xf32> to vector<16x128xf32>
    %63 = arith.mulf %60, %62 : vector<16x128xf32>
    %c1_28 = arith.constant 1 : index
    %c0_29 = arith.constant 0 : index
    %64 = vector.load %arg6[%c1_28, %c0_29] : memref<2x128xf32, #tpu.memory_space<vmem>>, vector<1x128xf32>
    %65 = vector.broadcast %64 : vector<1x128xf32> to vector<16x128xf32>
    %66 = arith.addf %63, %65 : vector<16x128xf32>
    %67 = arith.mulf %66, %66 : vector<16x128xf32>
    %cst_30 = arith.constant dense<0.000000e+00> : vector<16xf32>
    %68 = vector.multi_reduction <add>, %67, %cst_30 [1] : vector<16x128xf32> to vector<16xf32>
    %69 = vector.shape_cast %68 : vector<16xf32> to vector<16x1xf32>
    %70 = math.rsqrt %69 : vector<16x1xf32>
    %71 = vector.broadcast %70 : vector<16x1xf32> to vector<16x128xf32>
    %72 = arith.mulf %66, %71 : vector<16x128xf32>
    %c0_31 = arith.constant 0 : index
    %c0_32 = arith.constant 0 : index
    %73 = vector.load %arg8[%c0_31, %c0_32] : memref<16x128xf32, #tpu.memory_space<vmem>>, vector<16x128xf32>
    tpu.vector_store %arg8[%c0_31, %c0_32], %72 {strides = array<i32>} : memref<16x128xf32, #tpu.memory_space<vmem>>, vector<16x128xf32>,
    return
  }
  func.func @transform_0(%arg0: i32) -> (i32, i32) {
    %c0_i32 = arith.constant 0 : i32
    %c0_i32_0 = arith.constant 0 : i32
    return %arg0, %c0_i32 : i32, i32
  }
  func.func @transform_1(%arg0: i32) -> (i32, i32) {
    %c0_i32 = arith.constant 0 : i32
    %c0_i32_0 = arith.constant 0 : i32
    return %arg0, %c0_i32 : i32, i32
  }
  func.func @transform_2(%arg0: i32) -> (i32, i32) {
    %c0_i32 = arith.constant 0 : i32
    %c0_i32_0 = arith.constant 0 : i32
    %c0_i32_1 = arith.constant 0 : i32
    return %c0_i32, %c0_i32_0 : i32, i32
  }
  func.func @transform_3(%arg0: i32) -> (i32, i32) {
    %c0_i32 = arith.constant 0 : i32
    %c0_i32_0 = arith.constant 0 : i32
    %c0_i32_1 = arith.constant 0 : i32
    return %c0_i32, %c0_i32_0 : i32, i32
  }
  func.func @transform_4(%arg0: i32) -> (i32, i32) {
    %c0_i32 = arith.constant 0 : i32
    %c0_i32_0 = arith.constant 0 : i32
    %c0_i32_1 = arith.constant 0 : i32
    return %c0_i32, %c0_i32_0 : i32, i32
  }
  func.func @transform_5(%arg0: i32) -> (i32, i32) {
    %c0_i32 = arith.constant 0 : i32
    %c0_i32_0 = arith.constant 0 : i32
    %c0_i32_1 = arith.constant 0 : i32
    return %c0_i32, %c0_i32_0 : i32, i32
  }
  func.func @transform_6(%arg0: i32) -> (i32, i32) {
    %c0_i32 = arith.constant 0 : i32
    %c0_i32_0 = arith.constant 0 : i32
    return %arg0, %c0_i32 : i32, i32
  }
  func.func @transform_7(%arg0: i32) -> (i32, i32) {
    %c0_i32 = arith.constant 0 : i32
    %c0_i32_0 = arith.constant 0 : i32
    return %arg0, %c0_i32 : i32, i32
  }
}

</mosaic_0001>

<llo_original>
// kernel: clip_forward.1
$region0: #{clip_forward.1}
  #allocation0 [shape = 'u32[]', space=smem, size = 0x4, offset = 0x4, fixed_abs, tag = 'smem constant byte address 0x4 - core index']
  #allocation1 [shape = 'u32[144,128]{1,0:T(1,128)}', space=vmem, size = 0x12000, scoped, tag = 'internal scratch']
  %s0 = inlined_call_operand.vmem [shape: f32[16,64], index: 0, kind: input, shape index: {}]
  %s1 = inlined_call_operand.vmem [shape: f32[16,32], index: 1, kind: input, shape index: {}]
  %s2 = inlined_call_operand.vmem [shape: bf16[64,128], index: 2, kind: input, shape index: {}]
  %s3 = inlined_call_operand.vmem [shape: bf16[32,128], index: 3, kind: input, shape index: {}]
  %s4 = inlined_call_operand.vmem [shape: f32[2,128], index: 4, kind: input, shape index: {}]
  %s5 = inlined_call_operand.vmem [shape: f32[2,128], index: 5, kind: input, shape index: {}]
  %s6 = inlined_call_operand.vmem [shape: f32[16,128], index: 6, kind: output, shape index: {0}]
  %s7 = inlined_call_operand.vmem [shape: f32[16,128], index: 7, kind: output, shape index: {1}]
  %8 = xla_tuple %s6, %s7
  %s9 = sld [smem:[#allocation0]]
  $region42: #{clip_forward.1} parent=0
    _
  %s11 = ssub.s32 1, %s9
  %s12 = scalar_select 0, %s11, %s9
  // Predicated region
  $region2: #{clip_forward.1} parent=0 // pred_check
    _
  $region3: #{clip_forward.1} parent=0 // pred_check_branch
    %14 = sbr.rel (0) target = $region5
  $region4: #{clip_forward.1} parent=0 // pred_region
    _
  $region5: #{clip_forward.1} parent=0 // pred_fallthru
    _
  // Predicated region
  $region6: #{clip_forward.1} parent=0 // pred_check
    _
  $region7: #{clip_forward.1} parent=0 // pred_check_branch
    %16 = sbr.rel (0) target = $region9
  $region8: #{clip_forward.1} parent=0 // pred_region
    _
  $region9: #{clip_forward.1} parent=0 // pred_fallthru
    _
  // Predicated region
  $region10: #{clip_forward.1} parent=0 // pred_check
    _
  $region11: #{clip_forward.1} parent=0 // pred_check_branch
    %18 = sbr.rel (0) target = $region13
  $region12: #{clip_forward.1} parent=0 // pred_region
    _
  $region13: #{clip_forward.1} parent=0 // pred_fallthru
    _
  // Predicated region
  $region14: #{clip_forward.1} parent=0 // pred_check
    _
  $region15: #{clip_forward.1} parent=0 // pred_check_branch
    %20 = sbr.rel (0) target = $region17
  $region16: #{clip_forward.1} parent=0 // pred_region
    _
  $region17: #{clip_forward.1} parent=0 // pred_fallthru
    _
  // Predicated region
  $region18: #{clip_forward.1} parent=0 // pred_check
    _
  $region19: #{clip_forward.1} parent=0 // pred_check_branch
    %22 = sbr.rel (0) target = $region21
  $region20: #{clip_forward.1} parent=0 // pred_region
    _
  $region21: #{clip_forward.1} parent=0 // pred_fallthru
    _
  // Predicated region
  $region22: #{clip_forward.1} parent=0 // pred_check
    _
  $region23: #{clip_forward.1} parent=0 // pred_check_branch
    %24 = sbr.rel (0) target = $region25
  $region24: #{clip_forward.1} parent=0 // pred_region
    _
  $region25: #{clip_forward.1} parent=0 // pred_fallthru
    _
  %v26 = vld [vmem:[%s0] sm:$0xff]
  %v27 = vld [vmem:[%s0 + $0x8] sm:$0xff]
  %v28 = vpack.c.bf16 %v27, %v26
  %v29 = vld [vmem:[%s2] sm:$0xf]
  %v30 = vld [vmem:[%s2 + $0x4] sm:$0xf]
  %v31 = vld [vmem:[%s2 + $0x8] sm:$0xf]
  %v32 = vld [vmem:[%s2 + $0xc] sm:$0xf]
  %v33 = vld [vmem:[%s2 + $0x10] sm:$0xf]
  %v34 = vld [vmem:[%s2 + $0x14] sm:$0xf]
  %v35 = vld [vmem:[%s2 + $0x18] sm:$0xf]
  %v36 = vld [vmem:[%s2 + $0x1c] sm:$0xf]
  %v45 = vunpack.c.l.b16 %v29
  %v46 = vunpack.c.l.b16 %v30
  %v47 = vunpack.c.l.b16 %v31
  %v48 = vunpack.c.l.b16 %v32
  %v49 = vunpack.c.l.b16 %v33
  %v50 = vunpack.c.l.b16 %v34
  %v51 = vunpack.c.l.b16 %v35
  %v52 = vunpack.c.l.b16 %v36
  %v53 = vpack.c.b16 %v46, %v45
  %v54 = vpack.c.b16 %v48, %v47
  %v55 = vpack.c.b16 %v50, %v49
  %v56 = vpack.c.b16 %v52, %v51
  %vm61 = vcmask 523264
  %v63 = vsel %vm61, %v28, 0
  %65 = vmatprep.subr.bf16.mxu0 0
  %66 = vmatpush1.bf16.msra.mxu0 0
  %67 = vmatprep.subr.bf16.mxu0 0
  %68 = vmatpush1.bf16.msra.mxu0 0
  %69 = vmatprep.subr.bf16.mxu0 0
  %70 = vmatpush1.bf16.msra.mxu0 0
  %71 = vmatprep.subr.bf16.mxu0 0
  %72 = vmatpush1.bf16.msra.mxu0 0
  %73 = vmatprep.subr.bf16.mxu0 0
  %74 = vmatpush1.bf16.msra.mxu0 %v56
  %75 = vmatprep.subr.bf16.mxu0 0
  %76 = vmatpush1.bf16.msra.mxu0 %v55
  %77 = vmatprep.subr.bf16.mxu0 0
  %78 = vmatpush1.bf16.msra.mxu0 %v54
  %79 = vmatprep.subr.bf16.mxu0 0
  %80 = vmatpush1.bf16.msra.mxu0 %v53
  %81 = vmatprep.subr.bf16.mxu0 0
  %82 = vmatpush2.bf16.msra.mxu0 0
  %83 = vmatprep.subr.bf16.mxu0 0
  %84 = vmatpush2.bf16.msra.mxu0 0
  %85 = vmatprep.subr.bf16.mxu0 0
  %86 = vmatpush2.bf16.msra.mxu0 0
  %87 = vmatprep.subr.bf16.mxu0 0
  %88 = vmatpush2.bf16.msra.mxu0 0
  %89 = vmatprep.subr.bf16.mxu0 0
  %90 = vmatpush2.bf16.msra.mxu0 0
  %91 = vmatprep.subr.bf16.mxu0 0
  %92 = vmatpush2.bf16.msra.mxu0 0
  %93 = vmatprep.subr.bf16.mxu0 0
  %94 = vmatpush2.bf16.msra.mxu0 0
  %95 = vmatprep.subr.bf16.mxu0 0
  %96 = vmatpush2.bf16.msra.mxu0 0
  %97 = vmatprep.mubr.bf16.mxu0 0
  %98 = vmatmul.mubr.bf16.gmra.mxu0 %v63
  %v99 = vpop.f32.mrf.mxu0
  %v100 = vadd.f32 0.0, %v99
  %v101 = vpop.f32.mrf.mxu0
  %v102 = vpop.f32.mrf.mxu0
  %v103 = vadd.f32 0.0, %v102
  %v104 = vpop.f32.mrf.mxu0
  %105 = vdwg.mxu0
  %106 = vadd.xlane.f32.xlu0 %v100
  %v107 = vpop.xlane.xlu0 %106
  %108 = vadd.xlane.f32.xlu0 %v103
  %v109 = vpop.xlane.xlu0 %108
  %v110 = vmul.f32 %v107, 0.0078125
  %v111 = vmul.f32 %v109, 0.0078125
  %v112 = vmul.f32 %v100, %v100
  %v113 = vmul.f32 %v103, %v103
  %114 = vadd.xlane.f32.xlu0 %v112
  %v115 = vpop.xlane.xlu0 %114
  %116 = vadd.xlane.f32.xlu0 %v113
  %v117 = vpop.xlane.xlu0 %116
  %v118 = vmul.f32 %v115, 0.0078125
  %v119 = vmul.f32 %v117, 0.0078125
  %v120 = vmul.f32 %v110, %v110
  %v121 = vmul.f32 %v111, %v111
  %v122 = vsub.f32 %v118, %v120
  %v123 = vsub.f32 %v119, %v121
  %v124 = vmax.f32 %v122, 0.0
  %v125 = vmax.f32 %v123, 0.0
  %v126 = vsub.f32 %v100, %v110
  %v127 = vsub.f32 %v103, %v111
  %v128 = vadd.f32 %v124, 1e-05
  %v129 = vadd.f32 %v125, 1e-05
  %v130 = vrsqrt.pop %v128
  %v131 = vrsqrt.pop %v129
  %v132 = vmul.f32 %v126, %v130
  %v133 = vmul.f32 %v127, %v131
  %v134 = vld [vmem:[%s4] sm:$0x1]
  %v135 = vlaneseq
  %v136 = vshrl.u32 %v135, 7
  %v137 = vsub.s32 0, %v136
  %v138 = vrot.slane %v134, %v137
  %v139 = vmul.f32 %v132, %v138
  %v140 = vmul.f32 %v133, %v138
  %v141 = vld [vmem:[%s4 + $0x1] sm:$0x1]
  %v142 = vlaneseq
  %v143 = vshrl.u32 %v142, 7
  %v144 = vsub.s32 0, %v143
  %v145 = vrot.slane %v141, %v144
  %v146 = vadd.f32 %v139, %v145
  %v147 = vadd.f32 %v140, %v145
  %v148 = vmul.f32 %v146, %v146
  %v149 = vmul.f32 %v147, %v147
  %150 = vadd.xlane.f32.xlu0 %v148
  %v151 = vpop.xlane.xlu0 %150
  %152 = vadd.xlane.f32.xlu0 %v149
  %v153 = vpop.xlane.xlu0 %152
  %v154 = vrsqrt.pop %v151
  %v155 = vrsqrt.pop %v153
  %v156 = vmul.f32 %v146, %v154
  %v157 = vmul.f32 %v147, %v155
  %158 = vst [vmem:[%s6] sm:$0xff] %v156
  %159 = vst [vmem:[%s6 + $0x8] sm:$0xff] %v157
  %v160 = vld [vmem:[%s1] sm:$0xff]
  %v161 = vld [vmem:[%s1 + $0x8] sm:$0xff]
  %v162 = vpack.c.bf16 %v161, %v160
  %v163 = vld [vmem:[%s3] sm:$0xf]
  %v164 = vld [vmem:[%s3 + $0x4] sm:$0xf]
  %v165 = vld [vmem:[%s3 + $0x8] sm:$0xf]
  %v166 = vld [vmem:[%s3 + $0xc] sm:$0xf]
  %v171 = vunpack.c.l.b16 %v163
  %v172 = vunpack.c.l.b16 %v164
  %v173 = vunpack.c.l.b16 %v165
  %v174 = vunpack.c.l.b16 %v166
  %v175 = vpack.c.b16 %v172, %v171
  %v176 = vpack.c.b16 %v174, %v173
  %vm179 = vcmask 261120
  %v181 = vsel %vm179, %v162, 0
  %183 = vmatprep.subr.bf16.mxu0 0
  %184 = vmatpush1.bf16.msra.mxu0 0
  %185 = vmatprep.subr.bf16.mxu0 0
  %186 = vmatpush1.bf16.msra.mxu0 0
  %187 = vmatprep.subr.bf16.mxu0 0
  %188 = vmatpush1.bf16.msra.mxu0 0
  %189 = vmatprep.subr.bf16.mxu0 0
  %190 = vmatpush1.bf16.msra.mxu0 0
  %191 = vmatprep.subr.bf16.mxu0 0
  %192 = vmatpush1.bf16.msra.mxu0 0
  %193 = vmatprep.subr.bf16.mxu0 0
  %194 = vmatpush1.bf16.msra.mxu0 0
  %195 = vmatprep.subr.bf16.mxu0 0
  %196 = vmatpush1.bf16.msra.mxu0 %v176
  %197 = vmatprep.subr.bf16.mxu0 0
  %198 = vmatpush1.bf16.msra.mxu0 %v175
  %199 = vmatprep.subr.bf16.mxu0 0
  %200 = vmatpush2.bf16.msra.mxu0 0
  %201 = vmatprep.subr.bf16.mxu0 0
  %202 = vmatpush2.bf16.msra.mxu0 0
  %203 = vmatprep.subr.bf16.mxu0 0
  %204 = vmatpush2.bf16.msra.mxu0 0
  %205 = vmatprep.subr.bf16.mxu0 0
  %206 = vmatpush2.bf16.msra.mxu0 0
  %207 = vmatprep.subr.bf16.mxu0 0
  %208 = vmatpush2.bf16.msra.mxu0 0
  %209 = vmatprep.subr.bf16.mxu0 0
  %210 = vmatpush2.bf16.msra.mxu0 0
  %211 = vmatprep.subr.bf16.mxu0 0
  %212 = vmatpush2.bf16.msra.mxu0 0
  %213 = vmatprep.subr.bf16.mxu0 0
  %214 = vmatpush2.bf16.msra.mxu0 0
  %215 = vmatprep.mubr.bf16.mxu0 0
  %216 = vmatmul.mubr.bf16.gmra.mxu0 %v181
  %v217 = vpop.f32.mrf.mxu0
  %v218 = vadd.f32 0.0, %v217
  %v219 = vpop.f32.mrf.mxu0
  %v220 = vpop.f32.mrf.mxu0
  %v221 = vadd.f32 0.0, %v220
  %v222 = vpop.f32.mrf.mxu0
  %223 = vdwg.mxu0
  %224 = vadd.xlane.f32.xlu0 %v218
  %v225 = vpop.xlane.xlu0 %224
  %226 = vadd.xlane.f32.xlu0 %v221
  %v227 = vpop.xlane.xlu0 %226
  %v228 = vmul.f32 %v225, 0.0078125
  %v229 = vmul.f32 %v227, 0.0078125
  %v230 = vmul.f32 %v218, %v218
  %v231 = vmul.f32 %v221, %v221
  %232 = vadd.xlane.f32.xlu0 %v230
  %v233 = vpop.xlane.xlu0 %232
  %234 = vadd.xlane.f32.xlu0 %v231
  %v235 = vpop.xlane.xlu0 %234
  %v236 = vmul.f32 %v233, 0.0078125
  %v237 = vmul.f32 %v235, 0.0078125
  %v238 = vmul.f32 %v228, %v228
  %v239 = vmul.f32 %v229, %v229
  %v240 = vsub.f32 %v236, %v238
  %v241 = vsub.f32 %v237, %v239
  %v242 = vmax.f32 %v240, 0.0
  %v243 = vmax.f32 %v241, 0.0
  %v244 = vsub.f32 %v218, %v228
  %v245 = vsub.f32 %v221, %v229
  %v246 = vadd.f32 %v242, 1e-05
  %v247 = vadd.f32 %v243, 1e-05
  %v248 = vrsqrt.pop %v246
  %v249 = vrsqrt.pop %v247
  %v250 = vmul.f32 %v244, %v248
  %v251 = vmul.f32 %v245, %v249
  %v252 = vld [vmem:[%s5] sm:$0x1]
  %v253 = vlaneseq
  %v254 = vshrl.u32 %v253, 7
  %v255 = vsub.s32 0, %v254
  %v256 = vrot.slane %v252, %v255
  %v257 = vmul.f32 %v250, %v256
  %v258 = vmul.f32 %v251, %v256
  %v259 = vld [vmem:[%s5 + $0x1] sm:$0x1]
  %v260 = vlaneseq
  %v261 = vshrl.u32 %v260, 7
  %v262 = vsub.s32 0, %v261
  %v263 = vrot.slane %v259, %v262
  %v264 = vadd.f32 %v257, %v263
  %v265 = vadd.f32 %v258, %v263
  %v266 = vmul.f32 %v264, %v264
  %v267 = vmul.f32 %v265, %v265
  %268 = vadd.xlane.f32.xlu0 %v266
  %v269 = vpop.xlane.xlu0 %268
  %270 = vadd.xlane.f32.xlu0 %v267
  %v271 = vpop.xlane.xlu0 %270
  %v272 = vrsqrt.pop %v269
  %v273 = vrsqrt.pop %v271
  %v274 = vmul.f32 %v264, %v272
  %v275 = vmul.f32 %v265, %v273
  %276 = vst [vmem:[%s7] sm:$0xff] %v274
  %277 = vst [vmem:[%s7 + $0x8] sm:$0xff] %v275
  // Predicated region
  $region26: #{clip_forward.1} parent=0 // pred_check
    _
  $region27: #{clip_forward.1} parent=0 // pred_check_branch
    %279 = sbr.rel (0) target = $region29
  $region28: #{clip_forward.1} parent=0 // pred_region
    _
  $region29: #{clip_forward.1} parent=0 // pred_fallthru
    _
  // Predicated region
  $region30: #{clip_forward.1} parent=0 // pred_check
    _
  $region31: #{clip_forward.1} parent=0 // pred_check_branch
    %281 = sbr.rel (0) target = $region33
  $region32: #{clip_forward.1} parent=0 // pred_region
    _
  $region33: #{clip_forward.1} parent=0 // pred_fallthru
    _
  // Predicated region
  $region34: #{clip_forward.1} parent=0 // pred_check
    _
  $region35: #{clip_forward.1} parent=0 // pred_check_branch
    %283 = sbr.rel (0) target = $region37
  $region36: #{clip_forward.1} parent=0 // pred_region
    _
  $region37: #{clip_forward.1} parent=0 // pred_fallthru
    _
  // Predicated region
  $region38: #{clip_forward.1} parent=0 // pred_check
    _
  $region39: #{clip_forward.1} parent=0 // pred_check_branch
    %285 = sbr.rel (0) target = $region41
  $region40: #{clip_forward.1} parent=0 // pred_region
    _
  $region41: #{clip_forward.1} parent=0 // pred_fallthru
    _

</llo_original>
